<compile_context>
chip_gen: v7x
topology: tpu7x:2x2x1
jax: 0.10.0
libtpu: 0.0.40
codegen_flags: <defaults>
</compile_context>

<pallas_src>
import jax
import jax.numpy as jnp
from jax.experimental import pallas as pl
from jax.experimental.pallas import tpu as pltpu


def _cdiv(a, b):
    return -(-a // b)


def _round_up(a, b):
    return _cdiv(a, b) * b


def grad_mlp_kernel(xt_ref, w1_ref, b1_ref, w2_ref, b2_ref, w2b_ref, w1dt_ref, o_ref):
    """One batch tile (feature-major): d/dx sum(action(x)), data columns only.

    Shapes (TB = batch tile on the lane axis):
      xt   : (D+1, TB)  input columns               (compute dtype, bf16 default)
      w1   : (H, D+1)   W1                          (compute dtype)
      b1   : (H, 1)     bias 1                      (f32)
      w2   : (H, H)     W2                          (compute dtype)
      b2   : (H, 1)     bias 2                      (f32)
      w2b  : (H, H)     (w3_col * W2)^T, w3 folded  (compute dtype)
      w1dt : (D, H)     W1[:, :D]^T                 (compute dtype)
      out  : (D, TB)
    """
    cdt = xt_ref.dtype
    xt = xt_ref[...]

    # ---- forward (needed for the tanh' factors); f32 accumulate/elementwise ----
    h1 = jnp.tanh(jnp.dot(w1_ref[...], xt,
                          preferred_element_type=jnp.float32) + b1_ref[...])        # (H, TB)
    h2 = jnp.tanh(jnp.dot(w2_ref[...], h1.astype(cdt),
                          preferred_element_type=jnp.float32) + b2_ref[...])        # (H, TB)

    # ---- analytic backward of sum(scalar action) w.r.t. x (data columns only) ----
    # d/dh2 = w3 (folded into w2b); through tanh: * (1 - h^2).
    t2 = (1.0 - h2 * h2).astype(cdt)                                                 # (H, TB)
    g1 = jnp.dot(w2b_ref[...], t2,
                 preferred_element_type=jnp.float32) * (1.0 - h1 * h1)               # (H, TB)
    o_ref[...] = jnp.dot(w1dt_ref[...], g1.astype(cdt),
                         preferred_element_type=jnp.float32).astype(o_ref.dtype)     # (D, TB)


def grad_model_pallas(x, w1, b1, w2, b2, w3, *,
                      block_b=2048,
                      compute_dtype=jnp.bfloat16,
                      vmem_budget_bytes=24 << 20):
    """x: (B, D+1). Returns (B, D) = d/dx sum(action(x)) [:, :-1]."""
    B, D1 = x.shape
    D = D1 - 1
    H = w1.shape[0]
    out_dtype = x.dtype
    f32 = jnp.float32
    cdt = jnp.dtype(compute_dtype)

    # ---- one-time host-side weight prep (tiny) ----
    w1_c = w1.astype(cdt)                               # (H, D+1)
    w2_c = w2.astype(cdt)                               # (H, H)
    w2b_c = (w3.reshape(H, 1) * w2).T.astype(cdt)       # (H, H): w3 folded into backward weight
    w1dt_c = w1[:, :D].T.astype(cdt)                    # (D, H): time column dropped
    b1_c = b1.reshape(H, 1).astype(f32)                 # biases stay f32 (VPU add)
    b2_c = b2.reshape(H, 1).astype(f32)

    # ---- batch tile (lane dim): derived from a VMEM budget, multiple of 128 ----
    xbytes = cdt.itemsize
    obytes = jnp.dtype(out_dtype).itemsize
    per_col = 2 * D1 * xbytes + 2 * D * obytes + 6 * H * 4      # dbuf x/out + f32 intermediates
    w_alloc = 2 * ((H * D1 + 2 * H * H + D * H) * cdt.itemsize + 2 * H * 4)
    avail = max(0, vmem_budget_bytes - w_alloc)
    tb = max(128, (avail // per_col) // 128 * 128)
    tb = min(tb, max(128, _round_up(block_b, 128)))
    # give the pipeline (and both v7x TensorCores) at least ~4 grid steps on big batches
    tb = min(tb, max(128, _round_up(_cdiv(B, 4), 128)))
    steps = max(1, _cdiv(B, tb))
    if steps > 1 and steps % 2 == 1:                    # balanced megacore split
        tb = max(128, _round_up(_cdiv(B, steps + 1), 128))
    B_pad = _round_up(B, tb)
    grid = (B_pad // tb,)

    vmem_limit = int(min(64 << 20, max(32 << 20, w_alloc + tb * per_col + (4 << 20))))

    # ---- feature-major input: batch on the lane axis -> lane-dense stores ----
    x_c = x.astype(cdt)
    if B_pad != B:
        x_c = jnp.pad(x_c, ((0, B_pad - B), (0, 0)))    # padded rows: tanh-bounded, discarded
    xt = x_c.T                                          # (D+1, B_pad)

    def _call(single_buffer_weights):
        def wspec(shape):
            if single_buffer_weights:
                return pl.BlockSpec(shape, lambda i: (0, 0), pipeline_mode=pl.Buffered(1))
            return pl.BlockSpec(shape, lambda i: (0, 0))

        return pl.pallas_call(
            grad_mlp_kernel,
            out_shape=jax.ShapeDtypeStruct((D, B_pad), out_dtype),
            grid=grid,
            in_specs=[
                pl.BlockSpec((D1, tb), lambda i: (0, i)),   # x^T tile (streamed, double-buffered)
                wspec((H, D1)),                             # resident weights (constant index_map)
                wspec((H, 1)),
                wspec((H, H)),
                wspec((H, 1)),
                wspec((H, H)),
                wspec((D, H)),
            ],
            out_specs=pl.BlockSpec((D, tb), lambda i: (0, i)),
            compiler_params=pltpu.CompilerParams(
                dimension_semantics=("parallel",),          # megacore on v7x; free elsewhere
                vmem_limit_bytes=vmem_limit,
            ),
        )(xt, w1_c, b1_c, w2_c, b2_c, w2b_c, w1dt_c)

    try:
        out_t = _call(single_buffer_weights=True)
    except Exception:
        # pipeline_mode=pl.Buffered(1) (single-buffered resident weights) is not
        # available in every JAX version; fall back to default double buffering.
        out_t = _call(single_buffer_weights=False)

    return out_t[:, :B].T.astype(out_dtype)


# ---- pure-JAX reference (autodiff, mirrors the torch.autograd.grad path) ----
def _action_ref(x, w1, b1, w2, b2, w3, b3):
    h1 = jnp.tanh(x @ w1.T + b1)
    h2 = jnp.tanh(h1 @ w2.T + b2)
    return h2 @ w3.T + b3  # (B, 1)


def grad_model_ref(x, w1, b1, w2, b2, w3, b3):
    g = jax.grad(lambda xx: jnp.sum(_action_ref(xx, w1, b1, w2, b2, w3, b3)))(x)
    return g[:, :-1]


if __name__ == "__main__":
    B, D, H = 8, 16, 32           # x has D data dims + 1 time dim
    key = jax.random.PRNGKey(0)
    kx, k1, k2, k3, kb1, kb2 = jax.random.split(key, 6)

    x = jax.random.normal(kx, (B, D + 1), dtype=jnp.float32)

    # deterministic synthetic "action" MLP parameters (PyTorch Linear convention)
    w1 = jax.random.normal(k1, (H, D + 1), dtype=jnp.float32) * 0.2
    b1 = jax.random.normal(kb1, (1, H), dtype=jnp.float32) * 0.1
    w2 = jax.random.normal(k2, (H, H), dtype=jnp.float32) * 0.2
    b2 = jax.random.normal(kb2, (1, H), dtype=jnp.float32) * 0.1
    w3 = jax.random.normal(k3, (1, H), dtype=jnp.float32) * 0.2
    b3 = jnp.zeros((1,), dtype=jnp.float32)  # scalar-head bias; drops out of the gradient

    out = jax.block_until_ready(grad_model_pallas(x, w1, b1, w2, b2, w3))
    ref = grad_model_ref(x, w1, b1, w2, b2, w3, b3)

    assert out.shape == (B, D), out.shape
    err = float(jnp.max(jnp.abs(out - ref)))
    # tolerance loosened vs f32-only version because MXU operands are bf16
    assert err < 3e-2, f"max abs error {err}"

    print("KERNEL_OK")
</pallas_src>

<mosaic_0001>
module attributes {stable_mosaic.version = 11 : i64} {
  func.func @grad_mlp_kernel(%arg0: i32, %arg1: memref<17x128xbf16, #tpu.memory_space<vmem>>, %arg2: memref<32x17xbf16, #tpu.memory_space<vmem>>, %arg3: memref<32x1xf32, #tpu.memory_space<vmem>>, %arg4: memref<32x32xbf16, #tpu.memory_space<vmem>>, %arg5: memref<32x1xf32, #tpu.memory_space<vmem>>, %arg6: memref<32x32xbf16, #tpu.memory_space<vmem>>, %arg7: memref<16x32xbf16, #tpu.memory_space<vmem>>, %arg8: memref<16x128xf32, #tpu.memory_space<vmem>>) attributes {dimension_semantics = [#tpu.dimension_semantics<parallel>], iteration_bounds = array<i64: 1>, scalar_prefetch = 0 : i64, scratch_operands = 0 : i64, tpu.core_type = #tpu.core_type<tc>, window_params = [{transform_indices = @transform_0, window_bounds = array<i64: 17, 128>}, {pipeline_mode = #tpu.pipeline_mode<synchronous>, transform_indices = @transform_1, window_bounds = array<i64: 32, 17>}, {pipeline_mode = #tpu.pipeline_mode<synchronous>, transform_indices = @transform_2, window_bounds = array<i64: 32, 1>}, {pipeline_mode = #tpu.pipeline_mode<synchronous>, transform_indices = @transform_3, window_bounds = array<i64: 32, 32>}, {pipeline_mode = #tpu.pipeline_mode<synchronous>, transform_indices = @transform_4, window_bounds = array<i64: 32, 1>}, {pipeline_mode = #tpu.pipeline_mode<synchronous>, transform_indices = @transform_5, window_bounds = array<i64: 32, 32>}, {pipeline_mode = #tpu.pipeline_mode<synchronous>, transform_indices = @transform_6, window_bounds = array<i64: 16, 32>}, {transform_indices = @transform_7, window_bounds = array<i64: 16, 128>}]} {
    %c0 = arith.constant 0 : index
    %c0_0 = arith.constant 0 : index
    %0 = vector.load %arg1[%c0, %c0_0] : memref<17x128xbf16, #tpu.memory_space<vmem>>, vector<17x128xbf16>
    %c0_1 = arith.constant 0 : index
    %c0_2 = arith.constant 0 : index
    %1 = vector.load %arg2[%c0_1, %c0_2] : memref<32x17xbf16, #tpu.memory_space<vmem>>, vector<32x17xbf16>
    %cst = arith.constant dense<0.000000e+00> : vector<32x128xf32>
    %2 = tpu.matmul %1, %0, %cst {dimension_numbers = #tpu.dot_dimension_numbers<[1], [0], [0], [1], [0, 0, 1, 1], [], []>} : vector<32x17xbf16>, vector<17x128xbf16>, vector<32x128xf32> -> vector<32x128xf32>
    %c0_3 = arith.constant 0 : index
    %c0_4 = arith.constant 0 : index
    %3 = vector.load %arg3[%c0_3, %c0_4] : memref<32x1xf32, #tpu.memory_space<vmem>>, vector<32x1xf32>
    %4 = vector.broadcast %3 : vector<32x1xf32> to vector<32x128xf32>
    %5 = arith.addf %2, %4 : vector<32x128xf32>
    %6 = math.tanh %5 : vector<32x128xf32>
    %c0_5 = arith.constant 0 : index
    %c0_6 = arith.constant 0 : index
    %7 = vector.load %arg4[%c0_5, %c0_6] : memref<32x32xbf16, #tpu.memory_space<vmem>>, vector<32x32xbf16>
    %8 = arith.truncf %6 : vector<32x128xf32> to vector<32x128xbf16>
    %cst_7 = arith.constant dense<0.000000e+00> : vector<32x128xf32>
    %9 = tpu.matmul %7, %8, %cst_7 {dimension_numbers = #tpu.dot_dimension_numbers<[1], [0], [0], [1], [0, 0, 1, 1], [], []>} : vector<32x32xbf16>, vector<32x128xbf16>, vector<32x128xf32> -> vector<32x128xf32>
    %c0_8 = arith.constant 0 : index
    %c0_9 = arith.constant 0 : index
    %10 = vector.load %arg5[%c0_8, %c0_9] : memref<32x1xf32, #tpu.memory_space<vmem>>, vector<32x1xf32>
    %11 = vector.broadcast %10 : vector<32x1xf32> to vector<32x128xf32>
    %12 = arith.addf %9, %11 : vector<32x128xf32>
    %13 = math.tanh %12 : vector<32x128xf32>
    %14 = arith.mulf %13, %13 : vector<32x128xf32>
    %cst_10 = arith.constant 1.000000e+00 : f32
    %15 = vector.broadcast %cst_10 : f32 to vector<32x128xf32>
    %16 = arith.subf %15, %14 : vector<32x128xf32>
    %17 = arith.truncf %16 : vector<32x128xf32> to vector<32x128xbf16>
    %c0_11 = arith.constant 0 : index
    %c0_12 = arith.constant 0 : index
    %18 = vector.load %arg6[%c0_11, %c0_12] : memref<32x32xbf16, #tpu.memory_space<vmem>>, vector<32x32xbf16>
    %cst_13 = arith.constant dense<0.000000e+00> : vector<32x128xf32>
    %19 = tpu.matmul %18, %17, %cst_13 {dimension_numbers = #tpu.dot_dimension_numbers<[1], [0], [0], [1], [0, 0, 1, 1], [], []>} : vector<32x32xbf16>, vector<32x128xbf16>, vector<32x128xf32> -> vector<32x128xf32>
    %20 = arith.mulf %6, %6 : vector<32x128xf32>
    %cst_14 = arith.constant 1.000000e+00 : f32
    %21 = vector.broadcast %cst_14 : f32 to vector<32x128xf32>
    %22 = arith.subf %21, %20 : vector<32x128xf32>
    %23 = arith.mulf %19, %22 : vector<32x128xf32>
    %c0_15 = arith.constant 0 : index
    %c0_16 = arith.constant 0 : index
    %24 = vector.load %arg7[%c0_15, %c0_16] : memref<16x32xbf16, #tpu.memory_space<vmem>>, vector<16x32xbf16>
    %25 = arith.truncf %23 : vector<32x128xf32> to vector<32x128xbf16>
    %cst_17 = arith.constant dense<0.000000e+00> : vector<16x128xf32>
    %26 = tpu.matmul %24, %25, %cst_17 {dimension_numbers = #tpu.dot_dimension_numbers<[1], [0], [0], [1], [0, 0, 1, 1], [], []>} : vector<16x32xbf16>, vector<32x128xbf16>, vector<16x128xf32> -> vector<16x128xf32>
    %c0_18 = arith.constant 0 : index
    %c0_19 = arith.constant 0 : index
    %27 = vector.load %arg8[%c0_18, %c0_19] : memref<16x128xf32, #tpu.memory_space<vmem>>, vector<16x128xf32>
    tpu.vector_store %arg8[%c0_18, %c0_19], %26 {strides = array<i32>} : memref<16x128xf32, #tpu.memory_space<vmem>>, vector<16x128xf32>,
    return
  }
  func.func @transform_0(%arg0: i32) -> (i32, i32) {
    %c0_i32 = arith.constant 0 : i32
    %c0_i32_0 = arith.constant 0 : i32
    return %c0_i32, %arg0 : i32, i32
  }
  func.func @transform_1(%arg0: i32) -> (i32, i32) {
    %c0_i32 = arith.constant 0 : i32
    %c0_i32_0 = arith.constant 0 : i32
    %c0_i32_1 = arith.constant 0 : i32
    return %c0_i32, %c0_i32_0 : i32, i32
  }
  func.func @transform_2(%arg0: i32) -> (i32, i32) {
    %c0_i32 = arith.constant 0 : i32
    %c0_i32_0 = arith.constant 0 : i32
    %c0_i32_1 = arith.constant 0 : i32
    return %c0_i32, %c0_i32_0 : i32, i32
  }
  func.func @transform_3(%arg0: i32) -> (i32, i32) {
    %c0_i32 = arith.constant 0 : i32
    %c0_i32_0 = arith.constant 0 : i32
    %c0_i32_1 = arith.constant 0 : i32
    return %c0_i32, %c0_i32_0 : i32, i32
  }
  func.func @transform_4(%arg0: i32) -> (i32, i32) {
    %c0_i32 = arith.constant 0 : i32
    %c0_i32_0 = arith.constant 0 : i32
    %c0_i32_1 = arith.constant 0 : i32
    return %c0_i32, %c0_i32_0 : i32, i32
  }
  func.func @transform_5(%arg0: i32) -> (i32, i32) {
    %c0_i32 = arith.constant 0 : i32
    %c0_i32_0 = arith.constant 0 : i32
    %c0_i32_1 = arith.constant 0 : i32
    return %c0_i32, %c0_i32_0 : i32, i32
  }
  func.func @transform_6(%arg0: i32) -> (i32, i32) {
    %c0_i32 = arith.constant 0 : i32
    %c0_i32_0 = arith.constant 0 : i32
    %c0_i32_1 = arith.constant 0 : i32
    return %c0_i32, %c0_i32_0 : i32, i32
  }
  func.func @transform_7(%arg0: i32) -> (i32, i32) {
    %c0_i32 = arith.constant 0 : i32
    %c0_i32_0 = arith.constant 0 : i32
    return %c0_i32, %arg0 : i32, i32
  }
}

module attributes {stable_mosaic.version = 11 : i64} {
  func.func @grad_mlp_kernel(%arg0: i32, %arg1: memref<17x128xbf16, #tpu.memory_space<vmem>>, %arg2: memref<32x17xbf16, #tpu.memory_space<vmem>>, %arg3: memref<32x1xf32, #tpu.memory_space<vmem>>, %arg4: memref<32x32xbf16, #tpu.memory_space<vmem>>, %arg5: memref<32x1xf32, #tpu.memory_space<vmem>>, %arg6: memref<32x32xbf16, #tpu.memory_space<vmem>>, %arg7: memref<16x32xbf16, #tpu.memory_space<vmem>>, %arg8: memref<16x128xf32, #tpu.memory_space<vmem>>) attributes {dimension_semantics = [#tpu.dimension_semantics<parallel>], iteration_bounds = array<i64: 1>, scalar_prefetch = 0 : i64, scratch_operands = 0 : i64, tpu.core_type = #tpu.core_type<tc>, window_params = [{transform_indices = @transform_0, window_bounds = array<i64: 17, 128>}, {pipeline_mode = #tpu.pipeline_mode<synchronous>, transform_indices = @transform_1, window_bounds = array<i64: 32, 17>}, {pipeline_mode = #tpu.pipeline_mode<synchronous>, transform_indices = @transform_2, window_bounds = array<i64: 32, 1>}, {pipeline_mode = #tpu.pipeline_mode<synchronous>, transform_indices = @transform_3, window_bounds = array<i64: 32, 32>}, {pipeline_mode = #tpu.pipeline_mode<synchronous>, transform_indices = @transform_4, window_bounds = array<i64: 32, 1>}, {pipeline_mode = #tpu.pipeline_mode<synchronous>, transform_indices = @transform_5, window_bounds = array<i64: 32, 32>}, {pipeline_mode = #tpu.pipeline_mode<synchronous>, transform_indices = @transform_6, window_bounds = array<i64: 16, 32>}, {transform_indices = @transform_7, window_bounds = array<i64: 16, 128>}]} {
    %c0 = arith.constant 0 : index
    %c0_0 = arith.constant 0 : index
    %0 = vector.load %arg1[%c0, %c0_0] : memref<17x128xbf16, #tpu.memory_space<vmem>>, vector<17x128xbf16>
    %c0_1 = arith.constant 0 : index
    %c0_2 = arith.constant 0 : index
    %1 = vector.load %arg2[%c0_1, %c0_2] : memref<32x17xbf16, #tpu.memory_space<vmem>>, vector<32x17xbf16>
    %cst = arith.constant dense<0.000000e+00> : vector<32x128xf32>
    %2 = tpu.matmul %1, %0, %cst {dimension_numbers = #tpu.dot_dimension_numbers<[1], [0], [0], [1], [0, 0, 1, 1], [], []>} : vector<32x17xbf16>, vector<17x128xbf16>, vector<32x128xf32> -> vector<32x128xf32>
    %c0_3 = arith.constant 0 : index
    %c0_4 = arith.constant 0 : index
    %3 = vector.load %arg3[%c0_3, %c0_4] : memref<32x1xf32, #tpu.memory_space<vmem>>, vector<32x1xf32>
    %4 = vector.broadcast %3 : vector<32x1xf32> to vector<32x128xf32>
    %5 = arith.addf %2, %4 : vector<32x128xf32>
    %6 = math.tanh %5 : vector<32x128xf32>
    %c0_5 = arith.constant 0 : index
    %c0_6 = arith.constant 0 : index
    %7 = vector.load %arg4[%c0_5, %c0_6] : memref<32x32xbf16, #tpu.memory_space<vmem>>, vector<32x32xbf16>
    %8 = arith.truncf %6 : vector<32x128xf32> to vector<32x128xbf16>
    %cst_7 = arith.constant dense<0.000000e+00> : vector<32x128xf32>
    %9 = tpu.matmul %7, %8, %cst_7 {dimension_numbers = #tpu.dot_dimension_numbers<[1], [0], [0], [1], [0, 0, 1, 1], [], []>} : vector<32x32xbf16>, vector<32x128xbf16>, vector<32x128xf32> -> vector<32x128xf32>
    %c0_8 = arith.constant 0 : index
    %c0_9 = arith.constant 0 : index
    %10 = vector.load %arg5[%c0_8, %c0_9] : memref<32x1xf32, #tpu.memory_space<vmem>>, vector<32x1xf32>
    %11 = vector.broadcast %10 : vector<32x1xf32> to vector<32x128xf32>
    %12 = arith.addf %9, %11 : vector<32x128xf32>
    %13 = math.tanh %12 : vector<32x128xf32>
    %14 = arith.mulf %13, %13 : vector<32x128xf32>
    %cst_10 = arith.constant 1.000000e+00 : f32
    %15 = vector.broadcast %cst_10 : f32 to vector<32x128xf32>
    %16 = arith.subf %15, %14 : vector<32x128xf32>
    %17 = arith.truncf %16 : vector<32x128xf32> to vector<32x128xbf16>
    %c0_11 = arith.constant 0 : index
    %c0_12 = arith.constant 0 : index
    %18 = vector.load %arg6[%c0_11, %c0_12] : memref<32x32xbf16, #tpu.memory_space<vmem>>, vector<32x32xbf16>
    %cst_13 = arith.constant dense<0.000000e+00> : vector<32x128xf32>
    %19 = tpu.matmul %18, %17, %cst_13 {dimension_numbers = #tpu.dot_dimension_numbers<[1], [0], [0], [1], [0, 0, 1, 1], [], []>} : vector<32x32xbf16>, vector<32x128xbf16>, vector<32x128xf32> -> vector<32x128xf32>
    %20 = arith.mulf %6, %6 : vector<32x128xf32>
    %cst_14 = arith.constant 1.000000e+00 : f32
    %21 = vector.broadcast %cst_14 : f32 to vector<32x128xf32>
    %22 = arith.subf %21, %20 : vector<32x128xf32>
    %23 = arith.mulf %19, %22 : vector<32x128xf32>
    %c0_15 = arith.constant 0 : index
    %c0_16 = arith.constant 0 : index
    %24 = vector.load %arg7[%c0_15, %c0_16] : memref<16x32xbf16, #tpu.memory_space<vmem>>, vector<16x32xbf16>
    %25 = arith.truncf %23 : vector<32x128xf32> to vector<32x128xbf16>
    %cst_17 = arith.constant dense<0.000000e+00> : vector<16x128xf32>
    %26 = tpu.matmul %24, %25, %cst_17 {dimension_numbers = #tpu.dot_dimension_numbers<[1], [0], [0], [1], [0, 0, 1, 1], [], []>} : vector<16x32xbf16>, vector<32x128xbf16>, vector<16x128xf32> -> vector<16x128xf32>
    %c0_18 = arith.constant 0 : index
    %c0_19 = arith.constant 0 : index
    %27 = vector.load %arg8[%c0_18, %c0_19] : memref<16x128xf32, #tpu.memory_space<vmem>>, vector<16x128xf32>
    tpu.vector_store %arg8[%c0_18, %c0_19], %26 {strides = array<i32>} : memref<16x128xf32, #tpu.memory_space<vmem>>, vector<16x128xf32>,
    return
  }
  func.func @transform_0(%arg0: i32) -> (i32, i32) {
    %c0_i32 = arith.constant 0 : i32
    %c0_i32_0 = arith.constant 0 : i32
    return %c0_i32, %arg0 : i32, i32
  }
  func.func @transform_1(%arg0: i32) -> (i32, i32) {
    %c0_i32 = arith.constant 0 : i32
    %c0_i32_0 = arith.constant 0 : i32
    %c0_i32_1 = arith.constant 0 : i32
    return %c0_i32, %c0_i32_0 : i32, i32
  }
  func.func @transform_2(%arg0: i32) -> (i32, i32) {
    %c0_i32 = arith.constant 0 : i32
    %c0_i32_0 = arith.constant 0 : i32
    %c0_i32_1 = arith.constant 0 : i32
    return %c0_i32, %c0_i32_0 : i32, i32
  }
  func.func @transform_3(%arg0: i32) -> (i32, i32) {
    %c0_i32 = arith.constant 0 : i32
    %c0_i32_0 = arith.constant 0 : i32
    %c0_i32_1 = arith.constant 0 : i32
    return %c0_i32, %c0_i32_0 : i32, i32
  }
  func.func @transform_4(%arg0: i32) -> (i32, i32) {
    %c0_i32 = arith.constant 0 : i32
    %c0_i32_0 = arith.constant 0 : i32
    %c0_i32_1 = arith.constant 0 : i32
    return %c0_i32, %c0_i32_0 : i32, i32
  }
  func.func @transform_5(%arg0: i32) -> (i32, i32) {
    %c0_i32 = arith.constant 0 : i32
    %c0_i32_0 = arith.constant 0 : i32
    %c0_i32_1 = arith.constant 0 : i32
    return %c0_i32, %c0_i32_0 : i32, i32
  }
  func.func @transform_6(%arg0: i32) -> (i32, i32) {
    %c0_i32 = arith.constant 0 : i32
    %c0_i32_0 = arith.constant 0 : i32
    %c0_i32_1 = arith.constant 0 : i32
    return %c0_i32, %c0_i32_0 : i32, i32
  }
  func.func @transform_7(%arg0: i32) -> (i32, i32) {
    %c0_i32 = arith.constant 0 : i32
    %c0_i32_0 = arith.constant 0 : i32
    return %c0_i32, %arg0 : i32, i32
  }
}

</mosaic_0001>

<llo_original>
// kernel: tpu_custom_call.1
$region0: #{tpu_custom_call.1}
  #allocation0 [shape = 'u32[]', space=smem, size = 0x4, offset = 0x4, fixed_abs, tag = 'smem constant byte address 0x4 - core index']
  #allocation1 [shape = 'u32[144,128]{1,0:T(1,128)}', space=vmem, size = 0x12000, scoped, tag = 'internal scratch']
  %s0 = inlined_call_operand.vmem [shape: bf16[17,128], index: 0, kind: input, shape index: {}]
  %s1 = inlined_call_operand.vmem [shape: bf16[32,17], index: 1, kind: input, shape index: {}]
  %s2 = inlined_call_operand.vmem [shape: f32[32,1], index: 2, kind: input, shape index: {}]
  %s3 = inlined_call_operand.vmem [shape: bf16[32,32], index: 3, kind: input, shape index: {}]
  %s4 = inlined_call_operand.vmem [shape: f32[32,1], index: 4, kind: input, shape index: {}]
  %s5 = inlined_call_operand.vmem [shape: bf16[32,32], index: 5, kind: input, shape index: {}]
  %s6 = inlined_call_operand.vmem [shape: bf16[16,32], index: 6, kind: input, shape index: {}]
  %s7 = inlined_call_operand.hbm [shape: f32[16,128], index: 7, kind: output, shape index: {}]
  %s8 = sld [smem:[#allocation0]]
  $region38: #{tpu_custom_call.1} parent=0
    _
  %s10 = ssub.s32 1, %s8
  %s11 = scalar_select 0, %s10, %s8
  $region1: #{tpu_custom_call.1} parent=0
    #allocation2 [shape = 'u8[8192]{0}', space=vmem, size = 0x2000, scoped, tag = 'output window, operand 0, single buffered']
    #allocation3 [shape = 's32[1]{0}', space=sflag, size = 0x4, scoped, tag = 'scoped memory for tpu_custom_call.1']
    %12 = vsyncpa [#allocation3], 0
    // Predicated region
    $region2: #{tpu_custom_call.1} parent=1 // pred_check
      _
    $region3: #{tpu_custom_call.1} parent=1 // pred_check_branch
      %14 = sbr.rel (0) target = $region5
    $region4: #{tpu_custom_call.1} parent=1 // pred_region
      _
    $region5: #{tpu_custom_call.1} parent=1 // pred_fallthru
      _
    // Predicated region
    $region6: #{tpu_custom_call.1} parent=1 // pred_check
      _
    $region7: #{tpu_custom_call.1} parent=1 // pred_check_branch
      %16 = sbr.rel (0) target = $region9
    $region8: #{tpu_custom_call.1} parent=1 // pred_region
      _
    $region9: #{tpu_custom_call.1} parent=1 // pred_fallthru
      _
    // Predicated region
    $region10: #{tpu_custom_call.1} parent=1 // pred_check
      _
    $region11: #{tpu_custom_call.1} parent=1 // pred_check_branch
      %18 = sbr.rel (0) target = $region13
    $region12: #{tpu_custom_call.1} parent=1 // pred_region
      _
    $region13: #{tpu_custom_call.1} parent=1 // pred_fallthru
      _
    // Predicated region
    $region14: #{tpu_custom_call.1} parent=1 // pred_check
      _
    $region15: #{tpu_custom_call.1} parent=1 // pred_check_branch
      %20 = sbr.rel (0) target = $region17
    $region16: #{tpu_custom_call.1} parent=1 // pred_region
      _
    $region17: #{tpu_custom_call.1} parent=1 // pred_fallthru
      _
    // Predicated region
    $region18: #{tpu_custom_call.1} parent=1 // pred_check
      _
    $region19: #{tpu_custom_call.1} parent=1 // pred_check_branch
      %22 = sbr.rel (0) target = $region21
    $region20: #{tpu_custom_call.1} parent=1 // pred_region
      _
    $region21: #{tpu_custom_call.1} parent=1 // pred_fallthru
      _
    // Predicated region
    $region22: #{tpu_custom_call.1} parent=1 // pred_check
      _
    $region23: #{tpu_custom_call.1} parent=1 // pred_check_branch
      %24 = sbr.rel (0) target = $region25
    $region24: #{tpu_custom_call.1} parent=1 // pred_region
      _
    $region25: #{tpu_custom_call.1} parent=1 // pred_fallthru
      _
    // Predicated region
    $region26: #{tpu_custom_call.1} parent=1 // pred_check
      _
    $region27: #{tpu_custom_call.1} parent=1 // pred_check_branch
      %26 = sbr.rel (0) target = $region29
    $region28: #{tpu_custom_call.1} parent=1 // pred_region
      _
    $region29: #{tpu_custom_call.1} parent=1 // pred_fallthru
      _
    %v28 = vld [vmem:[%s0] sm:$0xf]
    %v29 = vld [vmem:[%s0 + $0x4] sm:$0xf]
    %v30 = vld [vmem:[%s0 + $0x8] sm:$0x1]
    %v31 = vld [vmem:[%s1] sm:$0xf]
    %v32 = vld [vmem:[%s1 + $0x4] sm:$0xf]
    %v33 = vld [vmem:[%s1 + $0x8] sm:$0xf]
    %v34 = vld [vmem:[%s1 + $0xc] sm:$0xf]
    %v35 = vld [vmem:[%s2] sm:$0xff]
    %v36 = vld [vmem:[%s2 + $0x8] sm:$0xff]
    %v37 = vld [vmem:[%s2 + $0x10] sm:$0xff]
    %v38 = vld [vmem:[%s2 + $0x18] sm:$0xff]
    %40 = vset.pattern.permute.xlu0 0
    %41 = vperm.xlu0 %40, %v35
    %v42 = vpop.permute.xlu0 %41
    %45 = vset.pattern.permute.xlu0 0
    %46 = vperm.xlu0 %45, %v36
    %v47 = vpop.permute.xlu0 %46
    %50 = vset.pattern.permute.xlu0 0
    %51 = vperm.xlu0 %50, %v37
    %v52 = vpop.permute.xlu0 %51
    %55 = vset.pattern.permute.xlu0 0
    %56 = vperm.xlu0 %55, %v38
    %v57 = vpop.permute.xlu0 %56
    %v63 = vunpack.c.l.b16 %v31
    %v64 = vunpack.c.l.b16 %v32
    %v65 = vunpack.c.l.b16 %v33
    %v66 = vunpack.c.l.b16 %v34
    %v67 = vpack.c.b16 %v64, %v63
    %v68 = vpack.c.b16 %v66, %v65
    %v72 = vunpack.c.l.b16 %v28
    %v73 = vunpack.c.l.b16 %v29
    %v74 = vunpack.c.l.b16 %v30
    %v75 = vpack.c.b16 %v73, %v72
    %v76 = vpack.c.b16 %v74, %v74
    %vm78 = vcmask 138240
    %v80 = vsel %vm78, %v67, 0
    %v83 = vsel %vm78, %v68, 0
    %vm85 = vcmask 1040384
    %v86 = vsel 0, 4294967295, 65535
    %v87 = vsel %vm85, %v86, 0
    %v89 = vand.u32 %v76, %v87
    %91 = vmatprep.subr.bf16.mxu0 0
    %92 = vmatpush1.bf16.msra.mxu0 %v75
    %93 = vmatprep.subr.bf16.mxu0 0
    %94 = vmatpush1.bf16.msra.mxu0 %v89
    %95 = vmatprep.subr.bf16.mxu0 0
    %96 = vmatpush1.bf16.msra.mxu0 0
    %97 = vmatprep.subr.bf16.mxu0 0
    %98 = vmatpush1.bf16.msra.mxu0 0
    %99 = vmatprep.subr.bf16.mxu0 0
    %100 = vmatpush1.bf16.msra.mxu0 0
    %101 = vmatprep.subr.bf16.mxu0 0
    %102 = vmatpush1.bf16.msra.mxu0 0
    %103 = vmatprep.subr.bf16.mxu0 0
    %104 = vmatpush1.bf16.msra.mxu0 0
    %105 = vmatprep.subr.bf16.mxu0 0
    %106 = vmatpush1.bf16.msra.mxu0 0
    %107 = vmatprep.subr.bf16.mxu0 0
    %108 = vmatpush1.bf16.msra.mxu0 0
    %109 = vmatprep.subr.bf16.mxu0 0
    %110 = vmatpush1.bf16.msra.mxu0 0
    %111 = vmatprep.subr.bf16.mxu0 0
    %112 = vmatpush1.bf16.msra.mxu0 0
    %113 = vmatprep.subr.bf16.mxu0 0
    %114 = vmatpush1.bf16.msra.mxu0 0
    %115 = vmatprep.subr.bf16.mxu0 0
    %116 = vmatpush1.bf16.msra.mxu0 0
    %117 = vmatprep.subr.bf16.mxu0 0
    %118 = vmatpush1.bf16.msra.mxu0 0
    %119 = vmatprep.subr.bf16.mxu0 0
    %120 = vmatpush1.bf16.msra.mxu0 0
    %121 = vmatprep.subr.bf16.mxu0 0
    %122 = vmatpush1.bf16.msra.mxu0 0
    %123 = vmatprep.mubr.bf16.mxu0 0
    %124 = vmatmul.mubr.bf16.gmra.mrb[0].mxu0 %v80
    %v125 = vpop.f32.mrb[0].mxu0
    %v126 = vadd.f32 %v42, %v125
    %v127 = vpop.f32.mrb[0].mxu0
    %v128 = vpop.f32.mrb[0].mxu0
    %v129 = vadd.f32 %v47, %v128
    %v130 = vpop.f32.mrb[0].mxu0
    %131 = vmatprep.mubr.bf16.mxu0 0
    %132 = vmatmul.mubr.bf16.gmra.mrb[0].mxu0 %v83
    %v133 = vpop.f32.mrb[0].mxu0
    %v134 = vadd.f32 %v52, %v133
    %v135 = vpop.f32.mrb[0].mxu0
    %v136 = vpop.f32.mrb[0].mxu0
    %v137 = vadd.f32 %v57, %v136
    %v138 = vpop.f32.mrb[0].mxu0
    %139 = vdwg.mxu0
    %v140 = vtanh.pop %v126
    %v141 = vtanh.pop %v129
    %v142 = vtanh.pop %v134
    %v143 = vtanh.pop %v137
    %v144 = vld [vmem:[%s3] sm:$0xf]
    %v145 = vld [vmem:[%s3 + $0x4] sm:$0xf]
    %v146 = vld [vmem:[%s3 + $0x8] sm:$0xf]
    %v147 = vld [vmem:[%s3 + $0xc] sm:$0xf]
    %v148 = vpack.c.bf16 %v141, %v140
    %v149 = vpack.c.bf16 %v143, %v142
    %v150 = vld [vmem:[%s4] sm:$0xff]
    %v151 = vld [vmem:[%s4 + $0x8] sm:$0xff]
    %v152 = vld [vmem:[%s4 + $0x10] sm:$0xff]
    %v153 = vld [vmem:[%s4 + $0x18] sm:$0xff]
    %155 = vset.pattern.permute.xlu0 0
    %156 = vperm.xlu0 %155, %v150
    %v157 = vpop.permute.xlu0 %156
    %160 = vset.pattern.permute.xlu0 0
    %161 = vperm.xlu0 %160, %v151
    %v162 = vpop.permute.xlu0 %161
    %165 = vset.pattern.permute.xlu0 0
    %166 = vperm.xlu0 %165, %v152
    %v167 = vpop.permute.xlu0 %166
    %170 = vset.pattern.permute.xlu0 0
    %171 = vperm.xlu0 %170, %v153
    %v172 = vpop.permute.xlu0 %171
    %v178 = vunpack.c.l.b16 %v144
    %v179 = vunpack.c.l.b16 %v145
    %v180 = vunpack.c.l.b16 %v146
    %v181 = vunpack.c.l.b16 %v147
    %v182 = vpack.c.b16 %v179, %v178
    %v183 = vpack.c.b16 %v181, %v180
    %vm184 = vcmask 261120
    %v186 = vsel %vm184, %v182, 0
    %v189 = vsel %vm184, %v183, 0
    %191 = vmatprep.subr.bf16.mxu0 0
    %192 = vmatpush1.bf16.msra.mxu0 %v148
    %193 = vmatprep.subr.bf16.mxu0 0
    %194 = vmatpush1.bf16.msra.mxu0 %v149
    %195 = vmatprep.subr.bf16.mxu0 0
    %196 = vmatpush1.bf16.msra.mxu0 0
    %197 = vmatprep.subr.bf16.mxu0 0
    %198 = vmatpush1.bf16.msra.mxu0 0
    %199 = vmatprep.subr.bf16.mxu0 0
    %200 = vmatpush1.bf16.msra.mxu0 0
    %201 = vmatprep.subr.bf16.mxu0 0
    %202 = vmatpush1.bf16.msra.mxu0 0
    %203 = vmatprep.subr.bf16.mxu0 0
    %204 = vmatpush1.bf16.msra.mxu0 0
    %205 = vmatprep.subr.bf16.mxu0 0
    %206 = vmatpush1.bf16.msra.mxu0 0
    %207 = vmatprep.subr.bf16.mxu0 0
    %208 = vmatpush1.bf16.msra.mxu0 0
    %209 = vmatprep.subr.bf16.mxu0 0
    %210 = vmatpush1.bf16.msra.mxu0 0
    %211 = vmatprep.subr.bf16.mxu0 0
    %212 = vmatpush1.bf16.msra.mxu0 0
    %213 = vmatprep.subr.bf16.mxu0 0
    %214 = vmatpush1.bf16.msra.mxu0 0
    %215 = vmatprep.subr.bf16.mxu0 0
    %216 = vmatpush1.bf16.msra.mxu0 0
    %217 = vmatprep.subr.bf16.mxu0 0
    %218 = vmatpush1.bf16.msra.mxu0 0
    %219 = vmatprep.subr.bf16.mxu0 0
    %220 = vmatpush1.bf16.msra.mxu0 0
    %221 = vmatprep.subr.bf16.mxu0 0
    %222 = vmatpush1.bf16.msra.mxu0 0
    %223 = vmatprep.mubr.bf16.mxu0 0
    %224 = vmatmul.mubr.bf16.gmra.mrb[0].mxu0 %v186
    %v225 = vpop.f32.mrb[0].mxu0
    %v226 = vadd.f32 %v157, %v225
    %v227 = vpop.f32.mrb[0].mxu0
    %v228 = vpop.f32.mrb[0].mxu0
    %v229 = vadd.f32 %v162, %v228
    %v230 = vpop.f32.mrb[0].mxu0
    %231 = vmatprep.mubr.bf16.mxu0 0
    %232 = vmatmul.mubr.bf16.gmra.mrb[0].mxu0 %v189
    %v233 = vpop.f32.mrb[0].mxu0
    %v234 = vadd.f32 %v167, %v233
    %v235 = vpop.f32.mrb[0].mxu0
    %v236 = vpop.f32.mrb[0].mxu0
    %v237 = vadd.f32 %v172, %v236
    %v238 = vpop.f32.mrb[0].mxu0
    %239 = vdwg.mxu0
    %v240 = vtanh.pop %v226
    %v241 = vtanh.pop %v229
    %v242 = vtanh.pop %v234
    %v243 = vtanh.pop %v237
    %v244 = vmul.f32 %v240, %v240
    %v245 = vmul.f32 %v241, %v241
    %v246 = vmul.f32 %v242, %v242
    %v247 = vmul.f32 %v243, %v243
    %v248 = vsub.f32 1.0, %v244
    %v249 = vsub.f32 1.0, %v245
    %v250 = vsub.f32 1.0, %v246
    %v251 = vsub.f32 1.0, %v247
    %v252 = vpack.c.bf16 %v249, %v248
    %v253 = vpack.c.bf16 %v251, %v250
    %v254 = vld [vmem:[%s5] sm:$0xf]
    %v255 = vld [vmem:[%s5 + $0x4] sm:$0xf]
    %v256 = vld [vmem:[%s5 + $0x8] sm:$0xf]
    %v257 = vld [vmem:[%s5 + $0xc] sm:$0xf]
    %v262 = vunpack.c.l.b16 %v254
    %v263 = vunpack.c.l.b16 %v255
    %v264 = vunpack.c.l.b16 %v256
    %v265 = vunpack.c.l.b16 %v257
    %v266 = vpack.c.b16 %v263, %v262
    %v267 = vpack.c.b16 %v265, %v264
    %v269 = vsel %vm184, %v266, 0
    %v272 = vsel %vm184, %v267, 0
    %274 = vmatprep.subr.bf16.mxu0 0
    %275 = vmatpush1.bf16.msra.mxu0 %v252
    %276 = vmatprep.subr.bf16.mxu0 0
    %277 = vmatpush1.bf16.msra.mxu0 %v253
    %278 = vmatprep.subr.bf16.mxu0 0
    %279 = vmatpush1.bf16.msra.mxu0 0
    %280 = vmatprep.subr.bf16.mxu0 0
    %281 = vmatpush1.bf16.msra.mxu0 0
    %282 = vmatprep.subr.bf16.mxu0 0
    %283 = vmatpush1.bf16.msra.mxu0 0
    %284 = vmatprep.subr.bf16.mxu0 0
    %285 = vmatpush1.bf16.msra.mxu0 0
    %286 = vmatprep.subr.bf16.mxu0 0
    %287 = vmatpush1.bf16.msra.mxu0 0
    %288 = vmatprep.subr.bf16.mxu0 0
    %289 = vmatpush1.bf16.msra.mxu0 0
    %290 = vmatprep.subr.bf16.mxu0 0
    %291 = vmatpush1.bf16.msra.mxu0 0
    %292 = vmatprep.subr.bf16.mxu0 0
    %293 = vmatpush1.bf16.msra.mxu0 0
    %294 = vmatprep.subr.bf16.mxu0 0
    %295 = vmatpush1.bf16.msra.mxu0 0
    %296 = vmatprep.subr.bf16.mxu0 0
    %297 = vmatpush1.bf16.msra.mxu0 0
    %298 = vmatprep.subr.bf16.mxu0 0
    %299 = vmatpush1.bf16.msra.mxu0 0
    %300 = vmatprep.subr.bf16.mxu0 0
    %301 = vmatpush1.bf16.msra.mxu0 0
    %302 = vmatprep.subr.bf16.mxu0 0
    %303 = vmatpush1.bf16.msra.mxu0 0
    %304 = vmatprep.subr.bf16.mxu0 0
    %305 = vmatpush1.bf16.msra.mxu0 0
    %306 = vmatprep.mubr.bf16.mxu0 0
    %307 = vmatmul.mubr.bf16.gmra.mrb[0].mxu0 %v269
    %v308 = vpop.f32.mrb[0].mxu0
    %v309 = vadd.f32 0.0, %v308
    %v310 = vpop.f32.mrb[0].mxu0
    %v311 = vpop.f32.mrb[0].mxu0
    %v312 = vadd.f32 0.0, %v311
    %v313 = vpop.f32.mrb[0].mxu0
    %314 = vmatprep.mubr.bf16.mxu0 0
    %315 = vmatmul.mubr.bf16.gmra.mrb[0].mxu0 %v272
    %v316 = vpop.f32.mrb[0].mxu0
    %v317 = vadd.f32 0.0, %v316
    %v318 = vpop.f32.mrb[0].mxu0
    %v319 = vpop.f32.mrb[0].mxu0
    %v320 = vadd.f32 0.0, %v319
    %v321 = vpop.f32.mrb[0].mxu0
    %322 = vdwg.mxu0
    %v323 = vmul.f32 %v140, %v140
    %v324 = vmul.f32 %v141, %v141
    %v325 = vmul.f32 %v142, %v142
    %v326 = vmul.f32 %v143, %v143
    %v327 = vsub.f32 1.0, %v323
    %v328 = vsub.f32 1.0, %v324
    %v329 = vsub.f32 1.0, %v325
    %v330 = vsub.f32 1.0, %v326
    %v331 = vmul.f32 %v309, %v327
    %v332 = vmul.f32 %v312, %v328
    %v333 = vmul.f32 %v317, %v329
    %v334 = vmul.f32 %v320, %v330
    %v335 = vld [vmem:[%s6] sm:$0xf]
    %v336 = vld [vmem:[%s6 + $0x4] sm:$0xf]
    %v337 = vpack.c.bf16 %v332, %v331
    %v338 = vpack.c.bf16 %v334, %v333
    %v341 = vunpack.c.l.b16 %v335
    %v342 = vunpack.c.l.b16 %v336
    %v343 = vpack.c.b16 %v342, %v341
    %v345 = vsel %vm184, %v343, 0
    %347 = vmatprep.subr.bf16.mxu0 0
    %348 = vmatpush1.bf16.msra.mxu0 %v337
    %349 = vmatprep.subr.bf16.mxu0 0
    %350 = vmatpush1.bf16.msra.mxu0 %v338
    %351 = vmatprep.subr.bf16.mxu0 0
    %352 = vmatpush1.bf16.msra.mxu0 0
    %353 = vmatprep.subr.bf16.mxu0 0
    %354 = vmatpush1.bf16.msra.mxu0 0
    %355 = vmatprep.subr.bf16.mxu0 0
    %356 = vmatpush1.bf16.msra.mxu0 0
    %357 = vmatprep.subr.bf16.mxu0 0
    %358 = vmatpush1.bf16.msra.mxu0 0
    %359 = vmatprep.subr.bf16.mxu0 0
    %360 = vmatpush1.bf16.msra.mxu0 0
    %361 = vmatprep.subr.bf16.mxu0 0
    %362 = vmatpush1.bf16.msra.mxu0 0
    %363 = vmatprep.subr.bf16.mxu0 0
    %364 = vmatpush1.bf16.msra.mxu0 0
    %365 = vmatprep.subr.bf16.mxu0 0
    %366 = vmatpush1.bf16.msra.mxu0 0
    %367 = vmatprep.subr.bf16.mxu0 0
    %368 = vmatpush1.bf16.msra.mxu0 0
    %369 = vmatprep.subr.bf16.mxu0 0
    %370 = vmatpush1.bf16.msra.mxu0 0
    %371 = vmatprep.subr.bf16.mxu0 0
    %372 = vmatpush1.bf16.msra.mxu0 0
    %373 = vmatprep.subr.bf16.mxu0 0
    %374 = vmatpush1.bf16.msra.mxu0 0
    %375 = vmatprep.subr.bf16.mxu0 0
    %376 = vmatpush1.bf16.msra.mxu0 0
    %377 = vmatprep.subr.bf16.mxu0 0
    %378 = vmatpush1.bf16.msra.mxu0 0
    %379 = vmatprep.mubr.bf16.mxu0 0
    %380 = vmatmul.mubr.bf16.gmra.mrb[0].mxu0 %v345
    %v381 = vpop.f32.mrb[0].mxu0
    %v382 = vadd.f32 0.0, %v381
    %v383 = vpop.f32.mrb[0].mxu0
    %v384 = vpop.f32.mrb[0].mxu0
    %v385 = vadd.f32 0.0, %v384
    %v386 = vpop.f32.mrb[0].mxu0
    %387 = vdwg.mxu0
    %388 = vst [vmem:[#allocation2] sm:$0xff] %v382
    %389 = vst [vmem:[#allocation2 + $0x8] sm:$0xff] %v385
    // Predicated region
    $region30: #{tpu_custom_call.1} parent=1 // pred_check
      _
    $region31: #{tpu_custom_call.1} parent=1 // pred_check_branch
      %391 = sbr.rel (0) target = $region33
    $region32: #{tpu_custom_call.1} parent=1 // pred_region
      %s393 = ssub.s32 256, 256
      %394 = vsyncadd [#allocation3], %s393
      %s395 = sshll.u32 [#allocation2], 4
      %s396 = int_to_ptr.vmem [resolvable:$true] %s395
      %401 = dma.vmem_to_hbm [thread:$0]  %s396, 256, %s7, [#allocation3], 128, 128, 8
    $region33: #{tpu_custom_call.1} parent=1 // pred_fallthru
      _
    // Predicated region
    $region34: #{tpu_custom_call.1} parent=1 // pred_check
      _
    $region35: #{tpu_custom_call.1} parent=1 // pred_check_branch
      %403 = sbr.rel (0) target = $region37
    $region36: #{tpu_custom_call.1} parent=1 // pred_region
      %404 = dma.done [#allocation3], 256
    $region37: #{tpu_custom_call.1} parent=1 // pred_fallthru
      _
    %405 = vsyncpa [#allocation3], 1

// kernel: tpu_custom_call.1
$region0: #{tpu_custom_call.1}
  #allocation0 [shape = 'u32[]', space=smem, size = 0x4, offset = 0x4, fixed_abs, tag = 'smem constant byte address 0x4 - core index']
  #allocation1 [shape = 'u32[144,128]{1,0:T(1,128)}', space=vmem, size = 0x12000, scoped, tag = 'internal scratch']
  %s0 = inlined_call_operand.vmem [shape: bf16[17,128], index: 0, kind: input, shape index: {}]
  %s1 = inlined_call_operand.vmem [shape: bf16[32,17], index: 1, kind: input, shape index: {}]
  %s2 = inlined_call_operand.vmem [shape: f32[32,1], index: 2, kind: input, shape index: {}]
  %s3 = inlined_call_operand.vmem [shape: bf16[32,32], index: 3, kind: input, shape index: {}]
  %s4 = inlined_call_operand.vmem [shape: f32[32,1], index: 4, kind: input, shape index: {}]
  %s5 = inlined_call_operand.vmem [shape: bf16[32,32], index: 5, kind: input, shape index: {}]
  %s6 = inlined_call_operand.vmem [shape: bf16[16,32], index: 6, kind: input, shape index: {}]
  %s7 = inlined_call_operand.hbm [shape: f32[16,128], index: 7, kind: output, shape index: {}]
  %s8 = sld [smem:[#allocation0]]
  $region38: #{tpu_custom_call.1} parent=0
    _
  %s10 = ssub.s32 1, %s8
  %s11 = scalar_select 0, %s10, %s8
  $region1: #{tpu_custom_call.1} parent=0
    #allocation2 [shape = 'u8[8192]{0}', space=vmem, size = 0x2000, scoped, tag = 'output window, operand 0, single buffered']
    #allocation3 [shape = 's32[1]{0}', space=sflag, size = 0x4, scoped, tag = 'scoped memory for tpu_custom_call.1']
    %12 = vsyncpa [#allocation3], 0
    // Predicated region
    $region2: #{tpu_custom_call.1} parent=1 // pred_check
      _
    $region3: #{tpu_custom_call.1} parent=1 // pred_check_branch
      %14 = sbr.rel (0) target = $region5
    $region4: #{tpu_custom_call.1} parent=1 // pred_region
      _
    $region5: #{tpu_custom_call.1} parent=1 // pred_fallthru
      _
    // Predicated region
    $region6: #{tpu_custom_call.1} parent=1 // pred_check
      _
    $region7: #{tpu_custom_call.1} parent=1 // pred_check_branch
      %16 = sbr.rel (0) target = $region9
    $region8: #{tpu_custom_call.1} parent=1 // pred_region
      _
    $region9: #{tpu_custom_call.1} parent=1 // pred_fallthru
      _
    // Predicated region
    $region10: #{tpu_custom_call.1} parent=1 // pred_check
      _
    $region11: #{tpu_custom_call.1} parent=1 // pred_check_branch
      %18 = sbr.rel (0) target = $region13
    $region12: #{tpu_custom_call.1} parent=1 // pred_region
      _
    $region13: #{tpu_custom_call.1} parent=1 // pred_fallthru
      _
    // Predicated region
    $region14: #{tpu_custom_call.1} parent=1 // pred_check
      _
    $region15: #{tpu_custom_call.1} parent=1 // pred_check_branch
      %20 = sbr.rel (0) target = $region17
    $region16: #{tpu_custom_call.1} parent=1 // pred_region
      _
    $region17: #{tpu_custom_call.1} parent=1 // pred_fallthru
      _
    // Predicated region
    $region18: #{tpu_custom_call.1} parent=1 // pred_check
      _
    $region19: #{tpu_custom_call.1} parent=1 // pred_check_branch
      %22 = sbr.rel (0) target = $region21
    $region20: #{tpu_custom_call.1} parent=1 // pred_region
      _
    $region21: #{tpu_custom_call.1} parent=1 // pred_fallthru
      _
    // Predicated region
    $region22: #{tpu_custom_call.1} parent=1 // pred_check
      _
    $region23: #{tpu_custom_call.1} parent=1 // pred_check_branch
      %24 = sbr.rel (0) target = $region25
    $region24: #{tpu_custom_call.1} parent=1 // pred_region
      _
    $region25: #{tpu_custom_call.1} parent=1 // pred_fallthru
      _
    // Predicated region
    $region26: #{tpu_custom_call.1} parent=1 // pred_check
      _
    $region27: #{tpu_custom_call.1} parent=1 // pred_check_branch
      %26 = sbr.rel (0) target = $region29
    $region28: #{tpu_custom_call.1} parent=1 // pred_region
      _
    $region29: #{tpu_custom_call.1} parent=1 // pred_fallthru
      _
    %v28 = vld [vmem:[%s0] sm:$0xf]
    %v29 = vld [vmem:[%s0 + $0x4] sm:$0xf]
    %v30 = vld [vmem:[%s0 + $0x8] sm:$0x1]
    %v31 = vld [vmem:[%s1] sm:$0xf]
    %v32 = vld [vmem:[%s1 + $0x4] sm:$0xf]
    %v33 = vld [vmem:[%s1 + $0x8] sm:$0xf]
    %v34 = vld [vmem:[%s1 + $0xc] sm:$0xf]
    %v35 = vld [vmem:[%s2] sm:$0xff]
    %v36 = vld [vmem:[%s2 + $0x8] sm:$0xff]
    %v37 = vld [vmem:[%s2 + $0x10] sm:$0xff]
    %v38 = vld [vmem:[%s2 + $0x18] sm:$0xff]
    %40 = vset.pattern.permute.xlu0 0
    %41 = vperm.xlu0 %40, %v35
    %v42 = vpop.permute.xlu0 %41
    %45 = vset.pattern.permute.xlu0 0
    %46 = vperm.xlu0 %45, %v36
    %v47 = vpop.permute.xlu0 %46
    %50 = vset.pattern.permute.xlu0 0
    %51 = vperm.xlu0 %50, %v37
    %v52 = vpop.permute.xlu0 %51
    %55 = vset.pattern.permute.xlu0 0
    %56 = vperm.xlu0 %55, %v38
    %v57 = vpop.permute.xlu0 %56
    %v63 = vunpack.c.l.b16 %v31
    %v64 = vunpack.c.l.b16 %v32
    %v65 = vunpack.c.l.b16 %v33
    %v66 = vunpack.c.l.b16 %v34
    %v67 = vpack.c.b16 %v64, %v63
    %v68 = vpack.c.b16 %v66, %v65
    %v72 = vunpack.c.l.b16 %v28
    %v73 = vunpack.c.l.b16 %v29
    %v74 = vunpack.c.l.b16 %v30
    %v75 = vpack.c.b16 %v73, %v72
    %v76 = vpack.c.b16 %v74, %v74
    %vm78 = vcmask 138240
    %v80 = vsel %vm78, %v67, 0
    %v83 = vsel %vm78, %v68, 0
    %vm85 = vcmask 1040384
    %v86 = vsel 0, 4294967295, 65535
    %v87 = vsel %vm85, %v86, 0
    %v89 = vand.u32 %v76, %v87
    %91 = vmatprep.subr.bf16.mxu0 0
    %92 = vmatpush1.bf16.msra.mxu0 %v75
    %93 = vmatprep.subr.bf16.mxu0 0
    %94 = vmatpush1.bf16.msra.mxu0 %v89
    %95 = vmatprep.subr.bf16.mxu0 0
    %96 = vmatpush1.bf16.msra.mxu0 0
    %97 = vmatprep.subr.bf16.mxu0 0
    %98 = vmatpush1.bf16.msra.mxu0 0
    %99 = vmatprep.subr.bf16.mxu0 0
    %100 = vmatpush1.bf16.msra.mxu0 0
    %101 = vmatprep.subr.bf16.mxu0 0
    %102 = vmatpush1.bf16.msra.mxu0 0
    %103 = vmatprep.subr.bf16.mxu0 0
    %104 = vmatpush1.bf16.msra.mxu0 0
    %105 = vmatprep.subr.bf16.mxu0 0
    %106 = vmatpush1.bf16.msra.mxu0 0
    %107 = vmatprep.subr.bf16.mxu0 0
    %108 = vmatpush1.bf16.msra.mxu0 0
    %109 = vmatprep.subr.bf16.mxu0 0
    %110 = vmatpush1.bf16.msra.mxu0 0
    %111 = vmatprep.subr.bf16.mxu0 0
    %112 = vmatpush1.bf16.msra.mxu0 0
    %113 = vmatprep.subr.bf16.mxu0 0
    %114 = vmatpush1.bf16.msra.mxu0 0
    %115 = vmatprep.subr.bf16.mxu0 0
    %116 = vmatpush1.bf16.msra.mxu0 0
    %117 = vmatprep.subr.bf16.mxu0 0
    %118 = vmatpush1.bf16.msra.mxu0 0
    %119 = vmatprep.subr.bf16.mxu0 0
    %120 = vmatpush1.bf16.msra.mxu0 0
    %121 = vmatprep.subr.bf16.mxu0 0
    %122 = vmatpush1.bf16.msra.mxu0 0
    %123 = vmatprep.mubr.bf16.mxu0 0
    %124 = vmatmul.mubr.bf16.gmra.mrb[0].mxu0 %v80
    %v125 = vpop.f32.mrb[0].mxu0
    %v126 = vadd.f32 %v42, %v125
    %v127 = vpop.f32.mrb[0].mxu0
    %v128 = vpop.f32.mrb[0].mxu0
    %v129 = vadd.f32 %v47, %v128
    %v130 = vpop.f32.mrb[0].mxu0
    %131 = vmatprep.mubr.bf16.mxu0 0
    %132 = vmatmul.mubr.bf16.gmra.mrb[0].mxu0 %v83
    %v133 = vpop.f32.mrb[0].mxu0
    %v134 = vadd.f32 %v52, %v133
    %v135 = vpop.f32.mrb[0].mxu0
    %v136 = vpop.f32.mrb[0].mxu0
    %v137 = vadd.f32 %v57, %v136
    %v138 = vpop.f32.mrb[0].mxu0
    %139 = vdwg.mxu0
    %v140 = vtanh.pop %v126
    %v141 = vtanh.pop %v129
    %v142 = vtanh.pop %v134
    %v143 = vtanh.pop %v137
    %v144 = vld [vmem:[%s3] sm:$0xf]
    %v145 = vld [vmem:[%s3 + $0x4] sm:$0xf]
    %v146 = vld [vmem:[%s3 + $0x8] sm:$0xf]
    %v147 = vld [vmem:[%s3 + $0xc] sm:$0xf]
    %v148 = vpack.c.bf16 %v141, %v140
    %v149 = vpack.c.bf16 %v143, %v142
    %v150 = vld [vmem:[%s4] sm:$0xff]
    %v151 = vld [vmem:[%s4 + $0x8] sm:$0xff]
    %v152 = vld [vmem:[%s4 + $0x10] sm:$0xff]
    %v153 = vld [vmem:[%s4 + $0x18] sm:$0xff]
    %155 = vset.pattern.permute.xlu0 0
    %156 = vperm.xlu0 %155, %v150
    %v157 = vpop.permute.xlu0 %156
    %160 = vset.pattern.permute.xlu0 0
    %161 = vperm.xlu0 %160, %v151
    %v162 = vpop.permute.xlu0 %161
    %165 = vset.pattern.permute.xlu0 0
    %166 = vperm.xlu0 %165, %v152
    %v167 = vpop.permute.xlu0 %166
    %170 = vset.pattern.permute.xlu0 0
    %171 = vperm.xlu0 %170, %v153
    %v172 = vpop.permute.xlu0 %171
    %v178 = vunpack.c.l.b16 %v144
    %v179 = vunpack.c.l.b16 %v145
    %v180 = vunpack.c.l.b16 %v146
    %v181 = vunpack.c.l.b16 %v147
    %v182 = vpack.c.b16 %v179, %v178
    %v183 = vpack.c.b16 %v181, %v180
    %vm184 = vcmask 261120
    %v186 = vsel %vm184, %v182, 0
    %v189 = vsel %vm184, %v183, 0
    %191 = vmatprep.subr.bf16.mxu0 0
    %192 = vmatpush1.bf16.msra.mxu0 %v148
    %193 = vmatprep.subr.bf16.mxu0 0
    %194 = vmatpush1.bf16.msra.mxu0 %v149
    %195 = vmatprep.subr.bf16.mxu0 0
    %196 = vmatpush1.bf16.msra.mxu0 0
    %197 = vmatprep.subr.bf16.mxu0 0
    %198 = vmatpush1.bf16.msra.mxu0 0
    %199 = vmatprep.subr.bf16.mxu0 0
    %200 = vmatpush1.bf16.msra.mxu0 0
    %201 = vmatprep.subr.bf16.mxu0 0
    %202 = vmatpush1.bf16.msra.mxu0 0
    %203 = vmatprep.subr.bf16.mxu0 0
    %204 = vmatpush1.bf16.msra.mxu0 0
    %205 = vmatprep.subr.bf16.mxu0 0
    %206 = vmatpush1.bf16.msra.mxu0 0
    %207 = vmatprep.subr.bf16.mxu0 0
    %208 = vmatpush1.bf16.msra.mxu0 0
    %209 = vmatprep.subr.bf16.mxu0 0
    %210 = vmatpush1.bf16.msra.mxu0 0
    %211 = vmatprep.subr.bf16.mxu0 0
    %212 = vmatpush1.bf16.msra.mxu0 0
    %213 = vmatprep.subr.bf16.mxu0 0
    %214 = vmatpush1.bf16.msra.mxu0 0
    %215 = vmatprep.subr.bf16.mxu0 0
    %216 = vmatpush1.bf16.msra.mxu0 0
    %217 = vmatprep.subr.bf16.mxu0 0
    %218 = vmatpush1.bf16.msra.mxu0 0
    %219 = vmatprep.subr.bf16.mxu0 0
    %220 = vmatpush1.bf16.msra.mxu0 0
    %221 = vmatprep.subr.bf16.mxu0 0
    %222 = vmatpush1.bf16.msra.mxu0 0
    %223 = vmatprep.mubr.bf16.mxu0 0
    %224 = vmatmul.mubr.bf16.gmra.mrb[0].mxu0 %v186
    %v225 = vpop.f32.mrb[0].mxu0
    %v226 = vadd.f32 %v157, %v225
    %v227 = vpop.f32.mrb[0].mxu0
    %v228 = vpop.f32.mrb[0].mxu0
    %v229 = vadd.f32 %v162, %v228
    %v230 = vpop.f32.mrb[0].mxu0
    %231 = vmatprep.mubr.bf16.mxu0 0
    %232 = vmatmul.mubr.bf16.gmra.mrb[0].mxu0 %v189
    %v233 = vpop.f32.mrb[0].mxu0
    %v234 = vadd.f32 %v167, %v233
    %v235 = vpop.f32.mrb[0].mxu0
    %v236 = vpop.f32.mrb[0].mxu0
    %v237 = vadd.f32 %v172, %v236
    %v238 = vpop.f32.mrb[0].mxu0
    %239 = vdwg.mxu0
    %v240 = vtanh.pop %v226
    %v241 = vtanh.pop %v229
    %v242 = vtanh.pop %v234
    %v243 = vtanh.pop %v237
    %v244 = vmul.f32 %v240, %v240
    %v245 = vmul.f32 %v241, %v241
    %v246 = vmul.f32 %v242, %v242
    %v247 = vmul.f32 %v243, %v243
    %v248 = vsub.f32 1.0, %v244
    %v249 = vsub.f32 1.0, %v245
    %v250 = vsub.f32 1.0, %v246
    %v251 = vsub.f32 1.0, %v247
    %v252 = vpack.c.bf16 %v249, %v248
    %v253 = vpack.c.bf16 %v251, %v250
    %v254 = vld [vmem:[%s5] sm:$0xf]
    %v255 = vld [vmem:[%s5 + $0x4] sm:$0xf]
    %v256 = vld [vmem:[%s5 + $0x8] sm:$0xf]
    %v257 = vld [vmem:[%s5 + $0xc] sm:$0xf]
    %v262 = vunpack.c.l.b16 %v254
    %v263 = vunpack.c.l.b16 %v255
    %v264 = vunpack.c.l.b16 %v256
    %v265 = vunpack.c.l.b16 %v257
    %v266 = vpack.c.b16 %v263, %v262
    %v267 = vpack.c.b16 %v265, %v264
    %v269 = vsel %vm184, %v266, 0
    %v272 = vsel %vm184, %v267, 0
    %274 = vmatprep.subr.bf16.mxu0 0
    %275 = vmatpush1.bf16.msra.mxu0 %v252
    %276 = vmatprep.subr.bf16.mxu0 0
    %277 = vmatpush1.bf16.msra.mxu0 %v253
    %278 = vmatprep.subr.bf16.mxu0 0
    %279 = vmatpush1.bf16.msra.mxu0 0
    %280 = vmatprep.subr.bf16.mxu0 0
    %281 = vmatpush1.bf16.msra.mxu0 0
    %282 = vmatprep.subr.bf16.mxu0 0
    %283 = vmatpush1.bf16.msra.mxu0 0
    %284 = vmatprep.subr.bf16.mxu0 0
    %285 = vmatpush1.bf16.msra.mxu0 0
    %286 = vmatprep.subr.bf16.mxu0 0
    %287 = vmatpush1.bf16.msra.mxu0 0
    %288 = vmatprep.subr.bf16.mxu0 0
    %289 = vmatpush1.bf16.msra.mxu0 0
    %290 = vmatprep.subr.bf16.mxu0 0
    %291 = vmatpush1.bf16.msra.mxu0 0
    %292 = vmatprep.subr.bf16.mxu0 0
    %293 = vmatpush1.bf16.msra.mxu0 0
    %294 = vmatprep.subr.bf16.mxu0 0
    %295 = vmatpush1.bf16.msra.mxu0 0
    %296 = vmatprep.subr.bf16.mxu0 0
    %297 = vmatpush1.bf16.msra.mxu0 0
    %298 = vmatprep.subr.bf16.mxu0 0
    %299 = vmatpush1.bf16.msra.mxu0 0
    %300 = vmatprep.subr.bf16.mxu0 0
    %301 = vmatpush1.bf16.msra.mxu0 0
    %302 = vmatprep.subr.bf16.mxu0 0
    %303 = vmatpush1.bf16.msra.mxu0 0
    %304 = vmatprep.subr.bf16.mxu0 0
    %305 = vmatpush1.bf16.msra.mxu0 0
    %306 = vmatprep.mubr.bf16.mxu0 0
    %307 = vmatmul.mubr.bf16.gmra.mrb[0].mxu0 %v269
    %v308 = vpop.f32.mrb[0].mxu0
    %v309 = vadd.f32 0.0, %v308
    %v310 = vpop.f32.mrb[0].mxu0
    %v311 = vpop.f32.mrb[0].mxu0
    %v312 = vadd.f32 0.0, %v311
    %v313 = vpop.f32.mrb[0].mxu0
    %314 = vmatprep.mubr.bf16.mxu0 0
    %315 = vmatmul.mubr.bf16.gmra.mrb[0].mxu0 %v272
    %v316 = vpop.f32.mrb[0].mxu0
    %v317 = vadd.f32 0.0, %v316
    %v318 = vpop.f32.mrb[0].mxu0
    %v319 = vpop.f32.mrb[0].mxu0
    %v320 = vadd.f32 0.0, %v319
    %v321 = vpop.f32.mrb[0].mxu0
    %322 = vdwg.mxu0
    %v323 = vmul.f32 %v140, %v140
    %v324 = vmul.f32 %v141, %v141
    %v325 = vmul.f32 %v142, %v142
    %v326 = vmul.f32 %v143, %v143
    %v327 = vsub.f32 1.0, %v323
    %v328 = vsub.f32 1.0, %v324
    %v329 = vsub.f32 1.0, %v325
    %v330 = vsub.f32 1.0, %v326
    %v331 = vmul.f32 %v309, %v327
    %v332 = vmul.f32 %v312, %v328
    %v333 = vmul.f32 %v317, %v329
    %v334 = vmul.f32 %v320, %v330
    %v335 = vld [vmem:[%s6] sm:$0xf]
    %v336 = vld [vmem:[%s6 + $0x4] sm:$0xf]
    %v337 = vpack.c.bf16 %v332, %v331
    %v338 = vpack.c.bf16 %v334, %v333
    %v341 = vunpack.c.l.b16 %v335
    %v342 = vunpack.c.l.b16 %v336
    %v343 = vpack.c.b16 %v342, %v341
    %v345 = vsel %vm184, %v343, 0
    %347 = vmatprep.subr.bf16.mxu0 0
    %348 = vmatpush1.bf16.msra.mxu0 %v337
    %349 = vmatprep.subr.bf16.mxu0 0
    %350 = vmatpush1.bf16.msra.mxu0 %v338
    %351 = vmatprep.subr.bf16.mxu0 0
    %352 = vmatpush1.bf16.msra.mxu0 0
    %353 = vmatprep.subr.bf16.mxu0 0
    %354 = vmatpush1.bf16.msra.mxu0 0
    %355 = vmatprep.subr.bf16.mxu0 0
    %356 = vmatpush1.bf16.msra.mxu0 0
    %357 = vmatprep.subr.bf16.mxu0 0
    %358 = vmatpush1.bf16.msra.mxu0 0
    %359 = vmatprep.subr.bf16.mxu0 0
    %360 = vmatpush1.bf16.msra.mxu0 0
    %361 = vmatprep.subr.bf16.mxu0 0
    %362 = vmatpush1.bf16.msra.mxu0 0
    %363 = vmatprep.subr.bf16.mxu0 0
    %364 = vmatpush1.bf16.msra.mxu0 0
    %365 = vmatprep.subr.bf16.mxu0 0
    %366 = vmatpush1.bf16.msra.mxu0 0
    %367 = vmatprep.subr.bf16.mxu0 0
    %368 = vmatpush1.bf16.msra.mxu0 0
    %369 = vmatprep.subr.bf16.mxu0 0
    %370 = vmatpush1.bf16.msra.mxu0 0
    %371 = vmatprep.subr.bf16.mxu0 0
    %372 = vmatpush1.bf16.msra.mxu0 0
    %373 = vmatprep.subr.bf16.mxu0 0
    %374 = vmatpush1.bf16.msra.mxu0 0
    %375 = vmatprep.subr.bf16.mxu0 0
    %376 = vmatpush1.bf16.msra.mxu0 0
    %377 = vmatprep.subr.bf16.mxu0 0
    %378 = vmatpush1.bf16.msra.mxu0 0
    %379 = vmatprep.mubr.bf16.mxu0 0
    %380 = vmatmul.mubr.bf16.gmra.mrb[0].mxu0 %v345
    %v381 = vpop.f32.mrb[0].mxu0
    %v382 = vadd.f32 0.0, %v381
    %v383 = vpop.f32.mrb[0].mxu0
    %v384 = vpop.f32.mrb[0].mxu0
    %v385 = vadd.f32 0.0, %v384
    %v386 = vpop.f32.mrb[0].mxu0
    %387 = vdwg.mxu0
    %388 = vst [vmem:[#allocation2] sm:$0xff] %v382
    %389 = vst [vmem:[#allocation2 + $0x8] sm:$0xff] %v385
    // Predicated region
    $region30: #{tpu_custom_call.1} parent=1 // pred_check
      _
    $region31: #{tpu_custom_call.1} parent=1 // pred_check_branch
      %391 = sbr.rel (0) target = $region33
    $region32: #{tpu_custom_call.1} parent=1 // pred_region
      %s393 = ssub.s32 256, 256
      %394 = vsyncadd [#allocation3], %s393
      %s395 = sshll.u32 [#allocation2], 4
      %s396 = int_to_ptr.vmem [resolvable:$true] %s395
      %401 = dma.vmem_to_hbm [thread:$0]  %s396, 256, %s7, [#allocation3], 128, 128, 8
    $region33: #{tpu_custom_call.1} parent=1 // pred_fallthru
      _
    // Predicated region
    $region34: #{tpu_custom_call.1} parent=1 // pred_check
      _
    $region35: #{tpu_custom_call.1} parent=1 // pred_check_branch
      %403 = sbr.rel (0) target = $region37
    $region36: #{tpu_custom_call.1} parent=1 // pred_region
      %404 = dma.done [#allocation3], 256
    $region37: #{tpu_custom_call.1} parent=1 // pred_fallthru
      _
    %405 = vsyncpa [#allocation3], 1

</llo_original>
